<compile_context>
chip_gen: v6e
topology: v6e:2x2x1
jax: 0.10.0
libtpu: 0.0.40
codegen_flags: <defaults>
</compile_context>

<pallas_src>
import functools

import jax
import jax.numpy as jnp
import numpy as np
from jax.experimental import pallas as pl
from jax.experimental.pallas import tpu as pltpu

LANE = 128


def _round_up(x, m):
    return (x + m - 1) // m * m


def _leaky_relu(x, slope=0.2):
    return jnp.where(x > 0, x, slope * x)


# --------------------------------------------------------------------------- #
# One-time parameter packing (host side, NOT in the per-call hot path).
# --------------------------------------------------------------------------- #
def pack_params(params):
    """Pack the 7 (W, b) pairs into two lane-padded slabs.

    Returns:
      w_slab : (L*P, P) bf16  -- each layer zero-padded to (P, P), P = 128
      b_slab : (>=8, P) f32   -- row l = layer-l bias, zero-padded
      meta   : dict(n_layers, pad_dim, in_dim, out_dim)
    """
    L = len(params)
    in_dim = int(params[0][0].shape[0])
    dims = [in_dim] + [int(w.shape[1]) for w, _ in params]
    out_dim = dims[-1]
    P = _round_up(max(dims), LANE)
    assert out_dim <= P and max(dims) <= P, "head wider than padded lane width"

    w_slab = np.zeros((L * P, P), np.float32)
    b_slab = np.zeros((max(8, L), P), np.float32)
    for l, (w, b) in enumerate(params):
        w_np = np.asarray(w, np.float32)
        b_np = np.asarray(b, np.float32)
        k, n = w_np.shape
        w_slab[l * P:l * P + k, :n] = w_np
        b_slab[l, :n] = b_np

    meta = dict(n_layers=L, pad_dim=P, in_dim=in_dim, out_dim=out_dim)
    return (jnp.asarray(w_slab, jnp.bfloat16),   # bf16 halves weight DMA bytes
            jnp.asarray(b_slab, jnp.float32),
            meta)


# --------------------------------------------------------------------------- #
# Kernel: one row-tile of the fused 7-layer MLP + masked log_softmax.
# --------------------------------------------------------------------------- #
def age_discriminator_kernel(x_ref, w_ref, b_ref, out_ref, *,
                             n_layers, in_dim, pad_dim, out_dim):
    """
    x_ref  : (TB, in_dim)     f32   raw activations (no lane padding)
    w_ref  : (n_layers*P, P)  bf16  zero-padded weight slab (VMEM resident)
    b_ref  : (8, P)           f32   zero-padded bias slab   (VMEM resident)
    out_ref: (TB, P)          f32/bf16 lane-dense log-probs (cols >= out_dim junk)
    """
    P = pad_dim

    # Layer 0: contract the un-padded (TB, in_dim) tile against the first
    # in_dim rows of the layer-0 weight block.
    h = x_ref[...].astype(jnp.bfloat16)
    y = jnp.dot(h, w_ref[0:in_dim, :], preferred_element_type=jnp.float32)
    y = y + b_ref[0:1, :]

    # Layers 1..L-1: padded lanes stay exactly 0 through the whole chain
    # (0 * W + 0 bias, LeakyReLU(0) = 0), so every pass is a lane-dense
    # (TB, 128) @ (128, 128) bf16 MXU matmul with f32 accumulation.
    for l in range(1, n_layers):
        h = _leaky_relu(y).astype(jnp.bfloat16)
        y = jnp.dot(h, w_ref[l * P:(l + 1) * P, :],
                    preferred_element_type=jnp.float32)
        y = y + b_ref[l:l + 1, :]

    # Mask padded class lanes out of the softmax reduction (store stays lane-dense).
    lane = jax.lax.broadcasted_iota(jnp.int32, y.shape, 1)
    scores = jnp.where(lane < out_dim, y, jnp.float32(-1e30))

    # Numerically stable log_softmax along dim=1.
    m = jnp.max(scores, axis=1, keepdims=True)          # XLU lane-reduce (keep)
    z = scores - m
    e = jnp.exp(z)                                       # EUP
    # Row-sum on the MXU: dotting exp(z) with a (P, P) all-ones matrix gives the
    # row sum replicated across all 128 lanes -- one vmatmul push per vreg
    # instead of ~7 XLU ops, and no extra broadcast for the subtraction below.
    ones = jnp.ones((P, P), jnp.float32)
    s = jnp.dot(e, ones, preferred_element_type=jnp.float32)
    out_ref[...] = (z - jnp.log(s)).astype(out_ref.dtype)


# --------------------------------------------------------------------------- #
# Tiling choice: multiple of 16, minimal row padding, >= 2 (even) grid steps.
# --------------------------------------------------------------------------- #
def _choose_batch_tile(B, tile_rows):
    n_steps = max(1, -(-B // tile_rows))
    if B > 16:
        n_steps = max(n_steps, 2)          # let v7x shard the batch over both TCs
    if n_steps > 1 and n_steps % 2:
        n_steps += 1                       # even step count -> balanced megacore split
    return _round_up(-(-B // n_steps), 16)


# --------------------------------------------------------------------------- #
# Jitted forward (hot path): consumes pre-packed slabs only.
# --------------------------------------------------------------------------- #
@functools.partial(jax.jit,
                   static_argnames=("n_layers", "pad_dim", "out_dim",
                                    "tile_rows", "out_dtype"))
def _forward_jit(ents_emb, w_slab, b_slab, *, n_layers, pad_dim, out_dim,
                 tile_rows, out_dtype):
    B, D = ents_emb.shape
    P = pad_dim
    L = n_layers

    TB = _choose_batch_tile(B, tile_rows)
    grid = (pl.cdiv(B, TB),)               # partial last block handled by Pallas

    kernel = functools.partial(age_discriminator_kernel,
                               n_layers=L, in_dim=D, pad_dim=P, out_dim=out_dim)

    out_itemsize = jnp.dtype(out_dtype).itemsize
    in_itemsize = ents_emb.dtype.itemsize

    # VMEM working-set estimate: double-buffered I/O tiles + resident slabs
    # + in-kernel constants + headroom for live f32 intermediates.
    vmem_est = (2 * TB * D * in_itemsize
                + 2 * TB * P * out_itemsize
                + 2 * (w_slab.size * w_slab.dtype.itemsize
                       + b_slab.size * b_slab.dtype.itemsize)
                + P * P * 4
                + 4 * TB * P * 4)
    vmem_limit = int(vmem_est * 1.5) if vmem_est > 12 * 1024 * 1024 else None

    cost = pl.CostEstimate(
        flops=2 * B * (L + 1) * P * P,
        transcendentals=B * P,
        bytes_accessed=(B * D * in_itemsize
                        + w_slab.size * w_slab.dtype.itemsize
                        + b_slab.size * b_slab.dtype.itemsize
                        + B * P * out_itemsize),
    )

    out = pl.pallas_call(
        kernel,
        out_shape=jax.ShapeDtypeStruct((B, P), out_dtype),
        grid=grid,
        in_specs=[
            pl.BlockSpec((TB, D), lambda i: (i, 0)),               # raw activation tile
            pl.BlockSpec((L * P, P), lambda i: (0, 0)),            # resident weights
            pl.BlockSpec((b_slab.shape[0], P), lambda i: (0, 0)),  # resident biases
        ],
        out_specs=pl.BlockSpec((TB, P), lambda i: (i, 0)),         # lane-dense store
        compiler_params=pltpu.CompilerParams(
            dimension_semantics=("parallel",),                     # megacore on v7x
            vmem_limit_bytes=vmem_limit),
        cost_estimate=cost,
    )(ents_emb, w_slab, b_slab)

    return out[:, :out_dim]


def age_discriminator_forward(ents_emb, w_slab, b_slab, *, n_layers, pad_dim,
                              in_dim, out_dim, tile_rows=2048,
                              out_dtype=jnp.float32):
    """ents_emb: (B, embed_dim) f32; slabs from pack_params()."""
    assert ents_emb.shape[1] == in_dim, "embedding width != packed layer-0 width"
    return _forward_jit(ents_emb, w_slab, b_slab, n_layers=n_layers,
                        pad_dim=pad_dim, out_dim=out_dim, tile_rows=tile_rows,
                        out_dtype=out_dtype)


# --------------------------------------------------------------------------- #
# Reference / init helpers.
# --------------------------------------------------------------------------- #
def init_params(key, embed_dim, out_dim):
    """Deterministic init matching the nn.Sequential layer shapes."""
    D = embed_dim
    dims = [D, 2 * D, 4 * D, 2 * D, 2 * D, D, D // 2, out_dim]
    params = []
    for i in range(len(dims) - 1):
        key, kw, kb = jax.random.split(key, 3)
        bound = 1.0 / np.sqrt(dims[i])
        w = jax.random.uniform(kw, (dims[i], dims[i + 1]), jnp.float32, -bound, bound)
        b = jax.random.uniform(kb, (dims[i + 1],), jnp.float32, -bound, bound)
        params.append((w, b))
    return params


def reference_forward(ents_emb, params):
    """Pure-JAX reference with the same bf16-weight / f32-accumulate numerics."""
    h = ents_emb.astype(jnp.bfloat16)
    for i, (w, b) in enumerate(params):
        y = jnp.dot(h, w.astype(jnp.bfloat16),
                    preferred_element_type=jnp.float32) + b
        if i != len(params) - 1:
            h = _leaky_relu(y).astype(jnp.bfloat16)
        else:
            h = y
    return jax.nn.log_softmax(h, axis=1)


if __name__ == "__main__":
    key = jax.random.PRNGKey(0)

    embed_dim = 32          # self.embed_dim
    out_dim = 7             # use_1M=True branch -> 7 age buckets
    batch = 8
    num_users = 20

    k_x, k_p, k_ents, k_sens = jax.random.split(key, 4)

    ents_emb = jax.random.normal(k_x, (batch, embed_dim), jnp.float32)
    params = init_params(k_p, embed_dim, out_dim)

    # Synthetic, deterministic "users_sensitive" table (stand-in for the
    # re-indexed MovieLens-1M age buckets) and entity ids.
    users_sensitive = jax.random.randint(k_sens, (num_users,), 0, out_dim, jnp.int32)
    ents = jax.random.randint(k_ents, (batch,), 0, num_users, jnp.int32)

    # One-time (per weight update) parameter packing -- NOT in the hot path.
    w_slab, b_slab, meta = pack_params(params)

    # Hot path: fused MLP + log_softmax in the Pallas kernel (jitted wrapper).
    log_probs = age_discriminator_forward(ents_emb, w_slab, b_slab, **meta)
    # Label gather is glue (plain JAX), as in the PyTorch forward.
    A_labels = jnp.take(users_sensitive, ents, axis=0)

    log_probs = jax.block_until_ready(log_probs)
    A_labels = jax.block_until_ready(A_labels)

    # Sanity check against a pure-JAX reference with matching numerics.
    ref = reference_forward(ents_emb, params)
    np.testing.assert_allclose(np.asarray(log_probs), np.asarray(ref),
                               rtol=1e-2, atol=1e-2)
    assert log_probs.shape == (batch, out_dim)
    assert A_labels.shape == (batch,)

    print("KERNEL_OK")
</pallas_src>

<mosaic_0001>
module attributes {stable_mosaic.version = 11 : i64} {
  func.func @age_discriminator_kernel(%arg0: i32, %arg1: memref<16x32xf32, #tpu.memory_space<vmem>>, %arg2: memref<896x128xbf16, #tpu.memory_space<vmem>>, %arg3: memref<8x128xf32, #tpu.memory_space<vmem>>, %arg4: memref<16x128xf32, #tpu.memory_space<vmem>>) attributes {dimension_semantics = [#tpu.dimension_semantics<parallel>], iteration_bounds = array<i64: 1>, scalar_prefetch = 0 : i64, scratch_operands = 0 : i64, tpu.core_type = #tpu.core_type<tc>, window_params = [{transform_indices = @transform_0, window_bounds = array<i64: 16, 32>}, {pipeline_mode = #tpu.pipeline_mode<synchronous>, transform_indices = @transform_1, window_bounds = array<i64: 896, 128>}, {pipeline_mode = #tpu.pipeline_mode<synchronous>, transform_indices = @transform_2, window_bounds = array<i64: 8, 128>}, {transform_indices = @transform_3, window_bounds = array<i64: 16, 128>}]} {
    %c0 = arith.constant 0 : index
    %c0_0 = arith.constant 0 : index
    %0 = vector.load %arg1[%c0, %c0_0] : memref<16x32xf32, #tpu.memory_space<vmem>>, vector<16x32xf32>
    %1 = arith.truncf %0 : vector<16x32xf32> to vector<16x32xbf16>
    %c0_1 = arith.constant 0 : index
    %c0_2 = arith.constant 0 : index
    %2 = vector.load %arg2[%c0_1, %c0_2] : memref<896x128xbf16, #tpu.memory_space<vmem>>, vector<32x128xbf16>
    %cst = arith.constant dense<0.000000e+00> : vector<16x128xf32>
    %3 = tpu.matmul %1, %2, %cst {dimension_numbers = #tpu.dot_dimension_numbers<[1], [0], [0], [1], [0, 0, 1, 1], [], []>} : vector<16x32xbf16>, vector<32x128xbf16>, vector<16x128xf32> -> vector<16x128xf32>
    %c0_3 = arith.constant 0 : index
    %c0_4 = arith.constant 0 : index
    %4 = vector.load %arg3[%c0_3, %c0_4] : memref<8x128xf32, #tpu.memory_space<vmem>>, vector<1x128xf32>
    %5 = vector.broadcast %4 : vector<1x128xf32> to vector<16x128xf32>
    %6 = arith.addf %3, %5 : vector<16x128xf32>
    %cst_5 = arith.constant 0.000000e+00 : f32
    %7 = vector.broadcast %cst_5 : f32 to vector<16x128xf32>
    %8 = arith.cmpf ogt, %6, %7 : vector<16x128xf32>
    %cst_6 = arith.constant 2.000000e-01 : f32
    %9 = vector.broadcast %cst_6 : f32 to vector<16x128xf32>
    %10 = arith.mulf %9, %6 : vector<16x128xf32>
    %11 = arith.select %8, %6, %10 : vector<16x128xi1>, vector<16x128xf32>
    %12 = arith.truncf %11 : vector<16x128xf32> to vector<16x128xbf16>
    %c128 = arith.constant 128 : index
    %c0_7 = arith.constant 0 : index
    %13 = vector.load %arg2[%c128, %c0_7] : memref<896x128xbf16, #tpu.memory_space<vmem>>, vector<128x128xbf16>
    %cst_8 = arith.constant dense<0.000000e+00> : vector<16x128xf32>
    %14 = tpu.matmul %12, %13, %cst_8 {dimension_numbers = #tpu.dot_dimension_numbers<[1], [0], [0], [1], [0, 0, 1, 1], [], []>} : vector<16x128xbf16>, vector<128x128xbf16>, vector<16x128xf32> -> vector<16x128xf32>
    %c1 = arith.constant 1 : index
    %c0_9 = arith.constant 0 : index
    %15 = vector.load %arg3[%c1, %c0_9] : memref<8x128xf32, #tpu.memory_space<vmem>>, vector<1x128xf32>
    %16 = vector.broadcast %15 : vector<1x128xf32> to vector<16x128xf32>
    %17 = arith.addf %14, %16 : vector<16x128xf32>
    %cst_10 = arith.constant 0.000000e+00 : f32
    %18 = vector.broadcast %cst_10 : f32 to vector<16x128xf32>
    %19 = arith.cmpf ogt, %17, %18 : vector<16x128xf32>
    %cst_11 = arith.constant 2.000000e-01 : f32
    %20 = vector.broadcast %cst_11 : f32 to vector<16x128xf32>
    %21 = arith.mulf %20, %17 : vector<16x128xf32>
    %22 = arith.select %19, %17, %21 : vector<16x128xi1>, vector<16x128xf32>
    %23 = arith.truncf %22 : vector<16x128xf32> to vector<16x128xbf16>
    %c256 = arith.constant 256 : index
    %c0_12 = arith.constant 0 : index
    %24 = vector.load %arg2[%c256, %c0_12] : memref<896x128xbf16, #tpu.memory_space<vmem>>, vector<128x128xbf16>
    %cst_13 = arith.constant dense<0.000000e+00> : vector<16x128xf32>
    %25 = tpu.matmul %23, %24, %cst_13 {dimension_numbers = #tpu.dot_dimension_numbers<[1], [0], [0], [1], [0, 0, 1, 1], [], []>} : vector<16x128xbf16>, vector<128x128xbf16>, vector<16x128xf32> -> vector<16x128xf32>
    %c2 = arith.constant 2 : index
    %c0_14 = arith.constant 0 : index
    %26 = vector.load %arg3[%c2, %c0_14] : memref<8x128xf32, #tpu.memory_space<vmem>>, vector<1x128xf32>
    %27 = vector.broadcast %26 : vector<1x128xf32> to vector<16x128xf32>
    %28 = arith.addf %25, %27 : vector<16x128xf32>
    %cst_15 = arith.constant 0.000000e+00 : f32
    %29 = vector.broadcast %cst_15 : f32 to vector<16x128xf32>
    %30 = arith.cmpf ogt, %28, %29 : vector<16x128xf32>
    %cst_16 = arith.constant 2.000000e-01 : f32
    %31 = vector.broadcast %cst_16 : f32 to vector<16x128xf32>
    %32 = arith.mulf %31, %28 : vector<16x128xf32>
    %33 = arith.select %30, %28, %32 : vector<16x128xi1>, vector<16x128xf32>
    %34 = arith.truncf %33 : vector<16x128xf32> to vector<16x128xbf16>
    %c384 = arith.constant 384 : index
    %c0_17 = arith.constant 0 : index
    %35 = vector.load %arg2[%c384, %c0_17] : memref<896x128xbf16, #tpu.memory_space<vmem>>, vector<128x128xbf16>
    %cst_18 = arith.constant dense<0.000000e+00> : vector<16x128xf32>
    %36 = tpu.matmul %34, %35, %cst_18 {dimension_numbers = #tpu.dot_dimension_numbers<[1], [0], [0], [1], [0, 0, 1, 1], [], []>} : vector<16x128xbf16>, vector<128x128xbf16>, vector<16x128xf32> -> vector<16x128xf32>
    %c3 = arith.constant 3 : index
    %c0_19 = arith.constant 0 : index
    %37 = vector.load %arg3[%c3, %c0_19] : memref<8x128xf32, #tpu.memory_space<vmem>>, vector<1x128xf32>
    %38 = vector.broadcast %37 : vector<1x128xf32> to vector<16x128xf32>
    %39 = arith.addf %36, %38 : vector<16x128xf32>
    %cst_20 = arith.constant 0.000000e+00 : f32
    %40 = vector.broadcast %cst_20 : f32 to vector<16x128xf32>
    %41 = arith.cmpf ogt, %39, %40 : vector<16x128xf32>
    %cst_21 = arith.constant 2.000000e-01 : f32
    %42 = vector.broadcast %cst_21 : f32 to vector<16x128xf32>
    %43 = arith.mulf %42, %39 : vector<16x128xf32>
    %44 = arith.select %41, %39, %43 : vector<16x128xi1>, vector<16x128xf32>
    %45 = arith.truncf %44 : vector<16x128xf32> to vector<16x128xbf16>
    %c512 = arith.constant 512 : index
    %c0_22 = arith.constant 0 : index
    %46 = vector.load %arg2[%c512, %c0_22] : memref<896x128xbf16, #tpu.memory_space<vmem>>, vector<128x128xbf16>
    %cst_23 = arith.constant dense<0.000000e+00> : vector<16x128xf32>
    %47 = tpu.matmul %45, %46, %cst_23 {dimension_numbers = #tpu.dot_dimension_numbers<[1], [0], [0], [1], [0, 0, 1, 1], [], []>} : vector<16x128xbf16>, vector<128x128xbf16>, vector<16x128xf32> -> vector<16x128xf32>
    %c4 = arith.constant 4 : index
    %c0_24 = arith.constant 0 : index
    %48 = vector.load %arg3[%c4, %c0_24] : memref<8x128xf32, #tpu.memory_space<vmem>>, vector<1x128xf32>
    %49 = vector.broadcast %48 : vector<1x128xf32> to vector<16x128xf32>
    %50 = arith.addf %47, %49 : vector<16x128xf32>
    %cst_25 = arith.constant 0.000000e+00 : f32
    %51 = vector.broadcast %cst_25 : f32 to vector<16x128xf32>
    %52 = arith.cmpf ogt, %50, %51 : vector<16x128xf32>
    %cst_26 = arith.constant 2.000000e-01 : f32
    %53 = vector.broadcast %cst_26 : f32 to vector<16x128xf32>
    %54 = arith.mulf %53, %50 : vector<16x128xf32>
    %55 = arith.select %52, %50, %54 : vector<16x128xi1>, vector<16x128xf32>
    %56 = arith.truncf %55 : vector<16x128xf32> to vector<16x128xbf16>
    %c640 = arith.constant 640 : index
    %c0_27 = arith.constant 0 : index
    %57 = vector.load %arg2[%c640, %c0_27] : memref<896x128xbf16, #tpu.memory_space<vmem>>, vector<128x128xbf16>
    %cst_28 = arith.constant dense<0.000000e+00> : vector<16x128xf32>
    %58 = tpu.matmul %56, %57, %cst_28 {dimension_numbers = #tpu.dot_dimension_numbers<[1], [0], [0], [1], [0, 0, 1, 1], [], []>} : vector<16x128xbf16>, vector<128x128xbf16>, vector<16x128xf32> -> vector<16x128xf32>
    %c5 = arith.constant 5 : index
    %c0_29 = arith.constant 0 : index
    %59 = vector.load %arg3[%c5, %c0_29] : memref<8x128xf32, #tpu.memory_space<vmem>>, vector<1x128xf32>
    %60 = vector.broadcast %59 : vector<1x128xf32> to vector<16x128xf32>
    %61 = arith.addf %58, %60 : vector<16x128xf32>
    %cst_30 = arith.constant 0.000000e+00 : f32
    %62 = vector.broadcast %cst_30 : f32 to vector<16x128xf32>
    %63 = arith.cmpf ogt, %61, %62 : vector<16x128xf32>
    %cst_31 = arith.constant 2.000000e-01 : f32
    %64 = vector.broadcast %cst_31 : f32 to vector<16x128xf32>
    %65 = arith.mulf %64, %61 : vector<16x128xf32>
    %66 = arith.select %63, %61, %65 : vector<16x128xi1>, vector<16x128xf32>
    %67 = arith.truncf %66 : vector<16x128xf32> to vector<16x128xbf16>
    %c768 = arith.constant 768 : index
    %c0_32 = arith.constant 0 : index
    %68 = vector.load %arg2[%c768, %c0_32] : memref<896x128xbf16, #tpu.memory_space<vmem>>, vector<128x128xbf16>
    %cst_33 = arith.constant dense<0.000000e+00> : vector<16x128xf32>
    %69 = tpu.matmul %67, %68, %cst_33 {dimension_numbers = #tpu.dot_dimension_numbers<[1], [0], [0], [1], [0, 0, 1, 1], [], []>} : vector<16x128xbf16>, vector<128x128xbf16>, vector<16x128xf32> -> vector<16x128xf32>
    %c6 = arith.constant 6 : index
    %c0_34 = arith.constant 0 : index
    %70 = vector.load %arg3[%c6, %c0_34] : memref<8x128xf32, #tpu.memory_space<vmem>>, vector<1x128xf32>
    %71 = vector.broadcast %70 : vector<1x128xf32> to vector<16x128xf32>
    %72 = arith.addf %69, %71 : vector<16x128xf32>
    %73 = tpu.iota {dimensions = array<i32: 1>} : vector<16x128xi32>
    %c7_i32 = arith.constant 7 : i32
    %74 = vector.broadcast %c7_i32 : i32 to vector<16x128xi32>
    %75 = arith.cmpi slt, %73, %74 : vector<16x128xi32>
    %cst_35 = arith.constant -1.000000e+30 : f32
    %76 = vector.broadcast %cst_35 : f32 to vector<16x128xf32>
    %77 = arith.select %75, %72, %76 : vector<16x128xi1>, vector<16x128xf32>
    %cst_36 = arith.constant dense<0xFF800000> : vector<16xf32>
    %78 = vector.multi_reduction <maximumf>, %77, %cst_36 [1] : vector<16x128xf32> to vector<16xf32>
    %79 = vector.shape_cast %78 : vector<16xf32> to vector<16x1xf32>
    %80 = vector.broadcast %79 : vector<16x1xf32> to vector<16x128xf32>
    %81 = arith.subf %77, %80 : vector<16x128xf32>
    %82 = math.exp %81 : vector<16x128xf32>
    %cst_37 = arith.constant 1.000000e+00 : f32
    %83 = vector.broadcast %cst_37 : f32 to vector<128x128xf32>
    %cst_38 = arith.constant dense<0.000000e+00> : vector<16x128xf32>
    %84 = tpu.matmul %82, %83, %cst_38 {dimension_numbers = #tpu.dot_dimension_numbers<[1], [0], [0], [1], [0, 0, 1, 1], [], []>} : vector<16x128xf32>, vector<128x128xf32>, vector<16x128xf32> -> vector<16x128xf32>
    %85 = math.log %84 : vector<16x128xf32>
    %86 = arith.subf %81, %85 : vector<16x128xf32>
    %c0_39 = arith.constant 0 : index
    %c0_40 = arith.constant 0 : index
    %87 = vector.load %arg4[%c0_39, %c0_40] : memref<16x128xf32, #tpu.memory_space<vmem>>, vector<16x128xf32>
    tpu.vector_store %arg4[%c0_39, %c0_40], %86 {strides = array<i32>} : memref<16x128xf32, #tpu.memory_space<vmem>>, vector<16x128xf32>,
    return
  }
  func.func @transform_0(%arg0: i32) -> (i32, i32) {
    %c0_i32 = arith.constant 0 : i32
    %c0_i32_0 = arith.constant 0 : i32
    return %arg0, %c0_i32 : i32, i32
  }
  func.func @transform_1(%arg0: i32) -> (i32, i32) {
    %c0_i32 = arith.constant 0 : i32
    %c0_i32_0 = arith.constant 0 : i32
    %c0_i32_1 = arith.constant 0 : i32
    return %c0_i32, %c0_i32_0 : i32, i32
  }
  func.func @transform_2(%arg0: i32) -> (i32, i32) {
    %c0_i32 = arith.constant 0 : i32
    %c0_i32_0 = arith.constant 0 : i32
    %c0_i32_1 = arith.constant 0 : i32
    return %c0_i32, %c0_i32_0 : i32, i32
  }
  func.func @transform_3(%arg0: i32) -> (i32, i32) {
    %c0_i32 = arith.constant 0 : i32
    %c0_i32_0 = arith.constant 0 : i32
    return %arg0, %c0_i32 : i32, i32
  }
}

</mosaic_0001>

<llo_original>
// kernel: _forward_jit.1
$region0: #{_forward_jit.1}
  #allocation0 [shape = 'u32[]', space=smem, size = 0x4, offset = 0x4, fixed_abs, tag = 'smem constant byte address 0x4 - core index']
  #allocation1 [shape = 'u32[144,128]{1,0:T(1,128)}', space=vmem, size = 0x12000, scoped, tag = 'internal scratch']
  %s0 = inlined_call_operand.hbm [shape: f32[8,32], index: 0, kind: input, shape index: {}]
  %s1 = inlined_call_operand.hbm [shape: bf16[896,128], index: 1, kind: input, shape index: {}]
  %s2 = inlined_call_operand.hbm [shape: f32[8,128], index: 2, kind: input, shape index: {}]
  %s3 = inlined_call_operand.hbm [shape: f32[8,128], index: 3, kind: output, shape index: {}]
  %s4 = sld [smem:[#allocation0]]
  $region34: #{_forward_jit.1} parent=0
    _
  %s6 = ssub.s32 1, %s4
  %s7 = scalar_select 0, %s6, %s4
  $region1: #{_forward_jit.1} parent=0
    #allocation2 [shape = 'u8[8192]{0}', space=vmem, size = 0x2000, scoped, tag = 'input window, operand 0, single buffered']
    #allocation3 [shape = 's32[1]{0}', space=sflag, size = 0x4, scoped, tag = 'scoped memory for _forward_jit.1']
    #allocation4 [shape = 's32[1]{0}', space=sflag, size = 0x4, scoped, tag = 'scoped memory for _forward_jit.1']
    #allocation5 [shape = 'u8[229376]{0}', space=vmem, size = 0x38000, scoped, tag = 'input window, operand 1, single buffered']
    #allocation6 [shape = 's32[1]{0}', space=sflag, size = 0x4, scoped, tag = 'scoped memory for _forward_jit.1']
    #allocation7 [shape = 'u8[4096]{0}', space=vmem, size = 0x1000, scoped, tag = 'input window, operand 2, single buffered']
    #allocation8 [shape = 'u8[8192]{0}', space=vmem, size = 0x2000, scoped, tag = 'output window, operand 0, single buffered']
    %8 = vsyncpa [#allocation3], 0
    %9 = vsyncpa [#allocation6], 0
    %10 = vsyncpa [#allocation4], 0
    // Predicated region
    $region2: #{_forward_jit.1} parent=1 // pred_check
      _
    $region3: #{_forward_jit.1} parent=1 // pred_check_branch
      %12 = sbr.rel (0) target = $region5
    $region4: #{_forward_jit.1} parent=1 // pred_region
      %s14 = ssub.s32 256, 128
      %15 = vsyncadd [#allocation3], %s14
      %s16 = sshll.u32 [#allocation2], 4
      %s17 = int_to_ptr.vmem [resolvable:$true] %s16
      %22 = dma.hbm_to_vmem [thread:$0]  %s0, 128, %s17, [#allocation3], 128, 128, 8
    $region5: #{_forward_jit.1} parent=1 // pred_fallthru
      _
    // Predicated region
    $region6: #{_forward_jit.1} parent=1 // pred_check
      _
    $region7: #{_forward_jit.1} parent=1 // pred_check_branch
      %24 = sbr.rel (0) target = $region9
    $region8: #{_forward_jit.1} parent=1 // pred_region
      %s26 = ssub.s32 7168, 7168
      %27 = vsyncadd [#allocation6], %s26
      %s28 = sshll.u32 [#allocation5], 4
      %s29 = int_to_ptr.vmem [resolvable:$true] %s28
      %34 = dma.hbm_to_vmem [thread:$0]  %s1, 7168, %s29, [#allocation6], 64, 64, 4
    $region9: #{_forward_jit.1} parent=1 // pred_fallthru
      _
    // Predicated region
    $region10: #{_forward_jit.1} parent=1 // pred_check
      _
    $region11: #{_forward_jit.1} parent=1 // pred_check_branch
      %36 = sbr.rel (0) target = $region13
    $region12: #{_forward_jit.1} parent=1 // pred_region
      %s38 = ssub.s32 128, 128
      %39 = vsyncadd [#allocation6], %s38
      %s41 = sshll.u32 [#allocation7], 4
      %s42 = int_to_ptr.vmem [resolvable:$true] %s41
      %44 = dma.hbm_to_vmem [thread:$0]  %s2, 128, %s42, [#allocation6]
    $region13: #{_forward_jit.1} parent=1 // pred_fallthru
      _
    // Predicated region
    $region14: #{_forward_jit.1} parent=1 // pred_check
      _
    $region15: #{_forward_jit.1} parent=1 // pred_check_branch
      %46 = sbr.rel (0) target = $region17
    $region16: #{_forward_jit.1} parent=1 // pred_region
      %47 = dma.done [#allocation3], 256
    $region17: #{_forward_jit.1} parent=1 // pred_fallthru
      _
    // Predicated region
    $region18: #{_forward_jit.1} parent=1 // pred_check
      _
    $region19: #{_forward_jit.1} parent=1 // pred_check_branch
      %49 = sbr.rel (0) target = $region21
    $region20: #{_forward_jit.1} parent=1 // pred_region
      %50 = dma.done [#allocation6], 7168
    $region21: #{_forward_jit.1} parent=1 // pred_fallthru
      _
    // Predicated region
    $region22: #{_forward_jit.1} parent=1 // pred_check
      _
    $region23: #{_forward_jit.1} parent=1 // pred_check_branch
      %52 = sbr.rel (0) target = $region25
    $region24: #{_forward_jit.1} parent=1 // pred_region
      %53 = dma.done [#allocation6], 128
    $region25: #{_forward_jit.1} parent=1 // pred_fallthru
      _
    %v55 = vld [vmem:[#allocation2] sm:$0xff]
    %v56 = vld [vmem:[#allocation2 + $0x8] sm:$0xff]
    %v57 = vpack.c.bf16 %v56, %v55
    %v58 = vld [vmem:[#allocation5] sm:$0xf]
    %v59 = vld [vmem:[#allocation5 + $0x4] sm:$0xf]
    %v60 = vld [vmem:[#allocation5 + $0x8] sm:$0xf]
    %v61 = vld [vmem:[#allocation5 + $0xc] sm:$0xf]
    %v62 = vld [vmem:[#allocation7] sm:$0x1]
    %v63 = vlaneseq
    %v64 = vshrl.u32 %v63, 7
    %v65 = vsub.s32 0, %v64
    %v66 = vrot.slane %v62, %v65
    %v71 = vunpack.c.l.b16 %v58
    %v72 = vunpack.c.l.b16 %v59
    %v73 = vunpack.c.l.b16 %v60
    %v74 = vunpack.c.l.b16 %v61
    %v75 = vpack.c.b16 %v72, %v71
    %v76 = vpack.c.b16 %v74, %v73
    %vm79 = vcmask 261120
    %v81 = vsel %vm79, %v57, 0
    %83 = vmatprep.subr.bf16.mxu0 0
    %84 = vmatpush1.bf16.msra.mxu0 0
    %85 = vmatprep.subr.bf16.mxu0 0
    %86 = vmatpush1.bf16.msra.mxu0 0
    %87 = vmatprep.subr.bf16.mxu0 0
    %88 = vmatpush1.bf16.msra.mxu0 0
    %89 = vmatprep.subr.bf16.mxu0 0
    %90 = vmatpush1.bf16.msra.mxu0 0
    %91 = vmatprep.subr.bf16.mxu0 0
    %92 = vmatpush1.bf16.msra.mxu0 0
    %93 = vmatprep.subr.bf16.mxu0 0
    %94 = vmatpush1.bf16.msra.mxu0 0
    %95 = vmatprep.subr.bf16.mxu0 0
    %96 = vmatpush1.bf16.msra.mxu0 %v76
    %97 = vmatprep.subr.bf16.mxu0 0
    %98 = vmatpush1.bf16.msra.mxu0 %v75
    %99 = vmatprep.subr.bf16.mxu0 0
    %100 = vmatpush2.bf16.msra.mxu0 0
    %101 = vmatprep.subr.bf16.mxu0 0
    %102 = vmatpush2.bf16.msra.mxu0 0
    %103 = vmatprep.subr.bf16.mxu0 0
    %104 = vmatpush2.bf16.msra.mxu0 0
    %105 = vmatprep.subr.bf16.mxu0 0
    %106 = vmatpush2.bf16.msra.mxu0 0
    %107 = vmatprep.subr.bf16.mxu0 0
    %108 = vmatpush2.bf16.msra.mxu0 0
    %109 = vmatprep.subr.bf16.mxu0 0
    %110 = vmatpush2.bf16.msra.mxu0 0
    %111 = vmatprep.subr.bf16.mxu0 0
    %112 = vmatpush2.bf16.msra.mxu0 0
    %113 = vmatprep.subr.bf16.mxu0 0
    %114 = vmatpush2.bf16.msra.mxu0 0
    %115 = vmatprep.mubr.bf16.mxu0 0
    %116 = vmatmul.mubr.bf16.gmra.mxu0 %v81
    %v117 = vpop.f32.mrf.mxu0
    %v118 = vadd.f32 %v66, %v117
    %v119 = vpop.f32.mrf.mxu0
    %v120 = vpop.f32.mrf.mxu0
    %v121 = vadd.f32 %v66, %v120
    %v122 = vpop.f32.mrf.mxu0
    %123 = vdwg.mxu0
    %vm124 = vcmp.gt.f32.partialorder %v118, 0.0
    %vm125 = vcmp.gt.f32.partialorder %v121, 0.0
    %v126 = vmul.f32 %v118, 0.2
    %v127 = vmul.f32 %v121, 0.2
    %v128 = vsel %vm124, %v118, %v126
    %v129 = vsel %vm125, %v121, %v127
    %v130 = vpack.c.bf16 %v129, %v128
    %v131 = vld [vmem:[#allocation5 + $0x40] sm:$0xf]
    %v132 = vld [vmem:[#allocation5 + $0x44] sm:$0xf]
    %v133 = vld [vmem:[#allocation5 + $0x48] sm:$0xf]
    %v134 = vld [vmem:[#allocation5 + $0x4c] sm:$0xf]
    %v135 = vld [vmem:[#allocation5 + $0x50] sm:$0xf]
    %v136 = vld [vmem:[#allocation5 + $0x54] sm:$0xf]
    %v137 = vld [vmem:[#allocation5 + $0x58] sm:$0xf]
    %v138 = vld [vmem:[#allocation5 + $0x5c] sm:$0xf]
    %v139 = vld [vmem:[#allocation5 + $0x60] sm:$0xf]
    %v140 = vld [vmem:[#allocation5 + $0x64] sm:$0xf]
    %v141 = vld [vmem:[#allocation5 + $0x68] sm:$0xf]
    %v142 = vld [vmem:[#allocation5 + $0x6c] sm:$0xf]
    %v143 = vld [vmem:[#allocation5 + $0x70] sm:$0xf]
    %v144 = vld [vmem:[#allocation5 + $0x74] sm:$0xf]
    %v145 = vld [vmem:[#allocation5 + $0x78] sm:$0xf]
    %v146 = vld [vmem:[#allocation5 + $0x7c] sm:$0xf]
    %v147 = vld [vmem:[#allocation7 + $0x1] sm:$0x1]
    %v148 = vlaneseq
    %v149 = vshrl.u32 %v148, 7
    %v150 = vsub.s32 0, %v149
    %v151 = vrot.slane %v147, %v150
    %v168 = vunpack.c.l.b16 %v131
    %v169 = vunpack.c.l.b16 %v132
    %v170 = vunpack.c.l.b16 %v133
    %v171 = vunpack.c.l.b16 %v134
    %v172 = vunpack.c.l.b16 %v135
    %v173 = vunpack.c.l.b16 %v136
    %v174 = vunpack.c.l.b16 %v137
    %v175 = vunpack.c.l.b16 %v138
    %v176 = vunpack.c.l.b16 %v139
    %v177 = vunpack.c.l.b16 %v140
    %v178 = vunpack.c.l.b16 %v141
    %v179 = vunpack.c.l.b16 %v142
    %v180 = vunpack.c.l.b16 %v143
    %v181 = vunpack.c.l.b16 %v144
    %v182 = vunpack.c.l.b16 %v145
    %v183 = vunpack.c.l.b16 %v146
    %v184 = vpack.c.b16 %v169, %v168
    %v185 = vpack.c.b16 %v171, %v170
    %v186 = vpack.c.b16 %v173, %v172
    %v187 = vpack.c.b16 %v175, %v174
    %v188 = vpack.c.b16 %v177, %v176
    %v189 = vpack.c.b16 %v179, %v178
    %v190 = vpack.c.b16 %v181, %v180
    %v191 = vpack.c.b16 %v183, %v182
    %200 = vmatprep.subr.bf16.mxu0 0
    %201 = vmatpush1.bf16.msra.mxu0 %v191
    %202 = vmatprep.subr.bf16.mxu0 0
    %203 = vmatpush1.bf16.msra.mxu0 %v190
    %204 = vmatprep.subr.bf16.mxu0 0
    %205 = vmatpush1.bf16.msra.mxu0 %v189
    %206 = vmatprep.subr.bf16.mxu0 0
    %207 = vmatpush1.bf16.msra.mxu0 %v188
    %208 = vmatprep.subr.bf16.mxu0 0
    %209 = vmatpush1.bf16.msra.mxu0 %v187
    %210 = vmatprep.subr.bf16.mxu0 0
    %211 = vmatpush1.bf16.msra.mxu0 %v186
    %212 = vmatprep.subr.bf16.mxu0 0
    %213 = vmatpush1.bf16.msra.mxu0 %v185
    %214 = vmatprep.subr.bf16.mxu0 0
    %215 = vmatpush1.bf16.msra.mxu0 %v184
    %216 = vmatprep.subr.bf16.mxu0 0
    %217 = vmatpush2.bf16.msra.mxu0 0
    %218 = vmatprep.subr.bf16.mxu0 0
    %219 = vmatpush2.bf16.msra.mxu0 0
    %220 = vmatprep.subr.bf16.mxu0 0
    %221 = vmatpush2.bf16.msra.mxu0 0
    %222 = vmatprep.subr.bf16.mxu0 0
    %223 = vmatpush2.bf16.msra.mxu0 0
    %224 = vmatprep.subr.bf16.mxu0 0
    %225 = vmatpush2.bf16.msra.mxu0 0
    %226 = vmatprep.subr.bf16.mxu0 0
    %227 = vmatpush2.bf16.msra.mxu0 0
    %228 = vmatprep.subr.bf16.mxu0 0
    %229 = vmatpush2.bf16.msra.mxu0 0
    %230 = vmatprep.subr.bf16.mxu0 0
    %231 = vmatpush2.bf16.msra.mxu0 0
    %232 = vmatprep.mubr.bf16.mxu0 0
    %233 = vmatmul.mubr.bf16.gmra.mxu0 %v130
    %v234 = vpop.f32.mrf.mxu0
    %v235 = vadd.f32 %v151, %v234
    %v236 = vpop.f32.mrf.mxu0
    %v237 = vpop.f32.mrf.mxu0
    %v238 = vadd.f32 %v151, %v237
    %v239 = vpop.f32.mrf.mxu0
    %240 = vdwg.mxu0
    %vm241 = vcmp.gt.f32.partialorder %v235, 0.0
    %vm242 = vcmp.gt.f32.partialorder %v238, 0.0
    %v243 = vmul.f32 %v235, 0.2
    %v244 = vmul.f32 %v238, 0.2
    %v245 = vsel %vm241, %v235, %v243
    %v246 = vsel %vm242, %v238, %v244
    %v247 = vpack.c.bf16 %v246, %v245
    %v248 = vld [vmem:[#allocation5 + $0x80] sm:$0xf]
    %v249 = vld [vmem:[#allocation5 + $0x84] sm:$0xf]
    %v250 = vld [vmem:[#allocation5 + $0x88] sm:$0xf]
    %v251 = vld [vmem:[#allocation5 + $0x8c] sm:$0xf]
    %v252 = vld [vmem:[#allocation5 + $0x90] sm:$0xf]
    %v253 = vld [vmem:[#allocation5 + $0x94] sm:$0xf]
    %v254 = vld [vmem:[#allocation5 + $0x98] sm:$0xf]
    %v255 = vld [vmem:[#allocation5 + $0x9c] sm:$0xf]
    %v256 = vld [vmem:[#allocation5 + $0xa0] sm:$0xf]
    %v257 = vld [vmem:[#allocation5 + $0xa4] sm:$0xf]
    %v258 = vld [vmem:[#allocation5 + $0xa8] sm:$0xf]
    %v259 = vld [vmem:[#allocation5 + $0xac] sm:$0xf]
    %v260 = vld [vmem:[#allocation5 + $0xb0] sm:$0xf]
    %v261 = vld [vmem:[#allocation5 + $0xb4] sm:$0xf]
    %v262 = vld [vmem:[#allocation5 + $0xb8] sm:$0xf]
    %v263 = vld [vmem:[#allocation5 + $0xbc] sm:$0xf]
    %v264 = vld [vmem:[#allocation7 + $0x2] sm:$0x1]
    %v265 = vlaneseq
    %v266 = vshrl.u32 %v265, 7
    %v267 = vsub.s32 0, %v266
    %v268 = vrot.slane %v264, %v267
    %v285 = vunpack.c.l.b16 %v248
    %v286 = vunpack.c.l.b16 %v249
    %v287 = vunpack.c.l.b16 %v250
    %v288 = vunpack.c.l.b16 %v251
    %v289 = vunpack.c.l.b16 %v252
    %v290 = vunpack.c.l.b16 %v253
    %v291 = vunpack.c.l.b16 %v254
    %v292 = vunpack.c.l.b16 %v255
    %v293 = vunpack.c.l.b16 %v256
    %v294 = vunpack.c.l.b16 %v257
    %v295 = vunpack.c.l.b16 %v258
    %v296 = vunpack.c.l.b16 %v259
    %v297 = vunpack.c.l.b16 %v260
    %v298 = vunpack.c.l.b16 %v261
    %v299 = vunpack.c.l.b16 %v262
    %v300 = vunpack.c.l.b16 %v263
    %v301 = vpack.c.b16 %v286, %v285
    %v302 = vpack.c.b16 %v288, %v287
    %v303 = vpack.c.b16 %v290, %v289
    %v304 = vpack.c.b16 %v292, %v291
    %v305 = vpack.c.b16 %v294, %v293
    %v306 = vpack.c.b16 %v296, %v295
    %v307 = vpack.c.b16 %v298, %v297
    %v308 = vpack.c.b16 %v300, %v299
    %317 = vmatprep.subr.bf16.mxu0 0
    %318 = vmatpush1.bf16.msra.mxu0 %v308
    %319 = vmatprep.subr.bf16.mxu0 0
    %320 = vmatpush1.bf16.msra.mxu0 %v307
    %321 = vmatprep.subr.bf16.mxu0 0
    %322 = vmatpush1.bf16.msra.mxu0 %v306
    %323 = vmatprep.subr.bf16.mxu0 0
    %324 = vmatpush1.bf16.msra.mxu0 %v305
    %325 = vmatprep.subr.bf16.mxu0 0
    %326 = vmatpush1.bf16.msra.mxu0 %v304
    %327 = vmatprep.subr.bf16.mxu0 0
    %328 = vmatpush1.bf16.msra.mxu0 %v303
    %329 = vmatprep.subr.bf16.mxu0 0
    %330 = vmatpush1.bf16.msra.mxu0 %v302
    %331 = vmatprep.subr.bf16.mxu0 0
    %332 = vmatpush1.bf16.msra.mxu0 %v301
    %333 = vmatprep.subr.bf16.mxu0 0
    %334 = vmatpush2.bf16.msra.mxu0 0
    %335 = vmatprep.subr.bf16.mxu0 0
    %336 = vmatpush2.bf16.msra.mxu0 0
    %337 = vmatprep.subr.bf16.mxu0 0
    %338 = vmatpush2.bf16.msra.mxu0 0
    %339 = vmatprep.subr.bf16.mxu0 0
    %340 = vmatpush2.bf16.msra.mxu0 0
    %341 = vmatprep.subr.bf16.mxu0 0
    %342 = vmatpush2.bf16.msra.mxu0 0
    %343 = vmatprep.subr.bf16.mxu0 0
    %344 = vmatpush2.bf16.msra.mxu0 0
    %345 = vmatprep.subr.bf16.mxu0 0
    %346 = vmatpush2.bf16.msra.mxu0 0
    %347 = vmatprep.subr.bf16.mxu0 0
    %348 = vmatpush2.bf16.msra.mxu0 0
    %349 = vmatprep.mubr.bf16.mxu0 0
    %350 = vmatmul.mubr.bf16.gmra.mxu0 %v247
    %v351 = vpop.f32.mrf.mxu0
    %v352 = vadd.f32 %v268, %v351
    %v353 = vpop.f32.mrf.mxu0
    %v354 = vpop.f32.mrf.mxu0
    %v355 = vadd.f32 %v268, %v354
    %v356 = vpop.f32.mrf.mxu0
    %357 = vdwg.mxu0
    %vm358 = vcmp.gt.f32.partialorder %v352, 0.0
    %vm359 = vcmp.gt.f32.partialorder %v355, 0.0
    %v360 = vmul.f32 %v352, 0.2
    %v361 = vmul.f32 %v355, 0.2
    %v362 = vsel %vm358, %v352, %v360
    %v363 = vsel %vm359, %v355, %v361
    %v364 = vpack.c.bf16 %v363, %v362
    %v365 = vld [vmem:[#allocation5 + $0xc0] sm:$0xf]
    %v366 = vld [vmem:[#allocation5 + $0xc4] sm:$0xf]
    %v367 = vld [vmem:[#allocation5 + $0xc8] sm:$0xf]
    %v368 = vld [vmem:[#allocation5 + $0xcc] sm:$0xf]
    %v369 = vld [vmem:[#allocation5 + $0xd0] sm:$0xf]
    %v370 = vld [vmem:[#allocation5 + $0xd4] sm:$0xf]
    %v371 = vld [vmem:[#allocation5 + $0xd8] sm:$0xf]
    %v372 = vld [vmem:[#allocation5 + $0xdc] sm:$0xf]
    %v373 = vld [vmem:[#allocation5 + $0xe0] sm:$0xf]
    %v374 = vld [vmem:[#allocation5 + $0xe4] sm:$0xf]
    %v375 = vld [vmem:[#allocation5 + $0xe8] sm:$0xf]
    %v376 = vld [vmem:[#allocation5 + $0xec] sm:$0xf]
    %v377 = vld [vmem:[#allocation5 + $0xf0] sm:$0xf]
    %v378 = vld [vmem:[#allocation5 + $0xf4] sm:$0xf]
    %v379 = vld [vmem:[#allocation5 + $0xf8] sm:$0xf]
    %v380 = vld [vmem:[#allocation5 + $0xfc] sm:$0xf]
    %v381 = vld [vmem:[#allocation7 + $0x3] sm:$0x1]
    %v382 = vlaneseq
    %v383 = vshrl.u32 %v382, 7
    %v384 = vsub.s32 0, %v383
    %v385 = vrot.slane %v381, %v384
    %v402 = vunpack.c.l.b16 %v365
    %v403 = vunpack.c.l.b16 %v366
    %v404 = vunpack.c.l.b16 %v367
    %v405 = vunpack.c.l.b16 %v368
    %v406 = vunpack.c.l.b16 %v369
    %v407 = vunpack.c.l.b16 %v370
    %v408 = vunpack.c.l.b16 %v371
    %v409 = vunpack.c.l.b16 %v372
    %v410 = vunpack.c.l.b16 %v373
    %v411 = vunpack.c.l.b16 %v374
    %v412 = vunpack.c.l.b16 %v375
    %v413 = vunpack.c.l.b16 %v376
    %v414 = vunpack.c.l.b16 %v377
    %v415 = vunpack.c.l.b16 %v378
    %v416 = vunpack.c.l.b16 %v379
    %v417 = vunpack.c.l.b16 %v380
    %v418 = vpack.c.b16 %v403, %v402
    %v419 = vpack.c.b16 %v405, %v404
    %v420 = vpack.c.b16 %v407, %v406
    %v421 = vpack.c.b16 %v409, %v408
    %v422 = vpack.c.b16 %v411, %v410
    %v423 = vpack.c.b16 %v413, %v412
    %v424 = vpack.c.b16 %v415, %v414
    %v425 = vpack.c.b16 %v417, %v416
    %434 = vmatprep.subr.bf16.mxu0 0
    %435 = vmatpush1.bf16.msra.mxu0 %v425
    %436 = vmatprep.subr.bf16.mxu0 0
    %437 = vmatpush1.bf16.msra.mxu0 %v424
    %438 = vmatprep.subr.bf16.mxu0 0
    %439 = vmatpush1.bf16.msra.mxu0 %v423
    %440 = vmatprep.subr.bf16.mxu0 0
    %441 = vmatpush1.bf16.msra.mxu0 %v422
    %442 = vmatprep.subr.bf16.mxu0 0
    %443 = vmatpush1.bf16.msra.mxu0 %v421
    %444 = vmatprep.subr.bf16.mxu0 0
    %445 = vmatpush1.bf16.msra.mxu0 %v420
    %446 = vmatprep.subr.bf16.mxu0 0
    %447 = vmatpush1.bf16.msra.mxu0 %v419
    %448 = vmatprep.subr.bf16.mxu0 0
    %449 = vmatpush1.bf16.msra.mxu0 %v418
    %450 = vmatprep.subr.bf16.mxu0 0
    %451 = vmatpush2.bf16.msra.mxu0 0
    %452 = vmatprep.subr.bf16.mxu0 0
    %453 = vmatpush2.bf16.msra.mxu0 0
    %454 = vmatprep.subr.bf16.mxu0 0
    %455 = vmatpush2.bf16.msra.mxu0 0
    %456 = vmatprep.subr.bf16.mxu0 0
    %457 = vmatpush2.bf16.msra.mxu0 0
    %458 = vmatprep.subr.bf16.mxu0 0
    %459 = vmatpush2.bf16.msra.mxu0 0
    %460 = vmatprep.subr.bf16.mxu0 0
    %461 = vmatpush2.bf16.msra.mxu0 0
    %462 = vmatprep.subr.bf16.mxu0 0
    %463 = vmatpush2.bf16.msra.mxu0 0
    %464 = vmatprep.subr.bf16.mxu0 0
    %465 = vmatpush2.bf16.msra.mxu0 0
    %466 = vmatprep.mubr.bf16.mxu0 0
    %467 = vmatmul.mubr.bf16.gmra.mxu0 %v364
    %v468 = vpop.f32.mrf.mxu0
    %v469 = vadd.f32 %v385, %v468
    %v470 = vpop.f32.mrf.mxu0
    %v471 = vpop.f32.mrf.mxu0
    %v472 = vadd.f32 %v385, %v471
    %v473 = vpop.f32.mrf.mxu0
    %474 = vdwg.mxu0
    %vm475 = vcmp.gt.f32.partialorder %v469, 0.0
    %vm476 = vcmp.gt.f32.partialorder %v472, 0.0
    %v477 = vmul.f32 %v469, 0.2
    %v478 = vmul.f32 %v472, 0.2
    %v479 = vsel %vm475, %v469, %v477
    %v480 = vsel %vm476, %v472, %v478
    %v481 = vpack.c.bf16 %v480, %v479
    %v482 = vld [vmem:[#allocation5 + $0x100] sm:$0xf]
    %v483 = vld [vmem:[#allocation5 + $0x104] sm:$0xf]
    %v484 = vld [vmem:[#allocation5 + $0x108] sm:$0xf]
    %v485 = vld [vmem:[#allocation5 + $0x10c] sm:$0xf]
    %v486 = vld [vmem:[#allocation5 + $0x110] sm:$0xf]
    %v487 = vld [vmem:[#allocation5 + $0x114] sm:$0xf]
    %v488 = vld [vmem:[#allocation5 + $0x118] sm:$0xf]
    %v489 = vld [vmem:[#allocation5 + $0x11c] sm:$0xf]
    %v490 = vld [vmem:[#allocation5 + $0x120] sm:$0xf]
    %v491 = vld [vmem:[#allocation5 + $0x124] sm:$0xf]
    %v492 = vld [vmem:[#allocation5 + $0x128] sm:$0xf]
    %v493 = vld [vmem:[#allocation5 + $0x12c] sm:$0xf]
    %v494 = vld [vmem:[#allocation5 + $0x130] sm:$0xf]
    %v495 = vld [vmem:[#allocation5 + $0x134] sm:$0xf]
    %v496 = vld [vmem:[#allocation5 + $0x138] sm:$0xf]
    %v497 = vld [vmem:[#allocation5 + $0x13c] sm:$0xf]
    %v498 = vld [vmem:[#allocation7 + $0x4] sm:$0x1]
    %v499 = vlaneseq
    %v500 = vshrl.u32 %v499, 7
    %v501 = vsub.s32 0, %v500
    %v502 = vrot.slane %v498, %v501
    %v519 = vunpack.c.l.b16 %v482
    %v520 = vunpack.c.l.b16 %v483
    %v521 = vunpack.c.l.b16 %v484
    %v522 = vunpack.c.l.b16 %v485
    %v523 = vunpack.c.l.b16 %v486
    %v524 = vunpack.c.l.b16 %v487
    %v525 = vunpack.c.l.b16 %v488
    %v526 = vunpack.c.l.b16 %v489
    %v527 = vunpack.c.l.b16 %v490
    %v528 = vunpack.c.l.b16 %v491
    %v529 = vunpack.c.l.b16 %v492
    %v530 = vunpack.c.l.b16 %v493
    %v531 = vunpack.c.l.b16 %v494
    %v532 = vunpack.c.l.b16 %v495
    %v533 = vunpack.c.l.b16 %v496
    %v534 = vunpack.c.l.b16 %v497
    %v535 = vpack.c.b16 %v520, %v519
    %v536 = vpack.c.b16 %v522, %v521
    %v537 = vpack.c.b16 %v524, %v523
    %v538 = vpack.c.b16 %v526, %v525
    %v539 = vpack.c.b16 %v528, %v527
    %v540 = vpack.c.b16 %v530, %v529
    %v541 = vpack.c.b16 %v532, %v531
    %v542 = vpack.c.b16 %v534, %v533
    %551 = vmatprep.subr.bf16.mxu0 0
    %552 = vmatpush1.bf16.msra.mxu0 %v542
    %553 = vmatprep.subr.bf16.mxu0 0
    %554 = vmatpush1.bf16.msra.mxu0 %v541
    %555 = vmatprep.subr.bf16.mxu0 0
    %556 = vmatpush1.bf16.msra.mxu0 %v540
    %557 = vmatprep.subr.bf16.mxu0 0
    %558 = vmatpush1.bf16.msra.mxu0 %v539
    %559 = vmatprep.subr.bf16.mxu0 0
    %560 = vmatpush1.bf16.msra.mxu0 %v538
    %561 = vmatprep.subr.bf16.mxu0 0
    %562 = vmatpush1.bf16.msra.mxu0 %v537
    %563 = vmatprep.subr.bf16.mxu0 0
    %564 = vmatpush1.bf16.msra.mxu0 %v536
    %565 = vmatprep.subr.bf16.mxu0 0
    %566 = vmatpush1.bf16.msra.mxu0 %v535
    %567 = vmatprep.subr.bf16.mxu0 0
    %568 = vmatpush2.bf16.msra.mxu0 0
    %569 = vmatprep.subr.bf16.mxu0 0
    %570 = vmatpush2.bf16.msra.mxu0 0
    %571 = vmatprep.subr.bf16.mxu0 0
    %572 = vmatpush2.bf16.msra.mxu0 0
    %573 = vmatprep.subr.bf16.mxu0 0
    %574 = vmatpush2.bf16.msra.mxu0 0
    %575 = vmatprep.subr.bf16.mxu0 0
    %576 = vmatpush2.bf16.msra.mxu0 0
    %577 = vmatprep.subr.bf16.mxu0 0
    %578 = vmatpush2.bf16.msra.mxu0 0
    %579 = vmatprep.subr.bf16.mxu0 0
    %580 = vmatpush2.bf16.msra.mxu0 0
    %581 = vmatprep.subr.bf16.mxu0 0
    %582 = vmatpush2.bf16.msra.mxu0 0
    %583 = vmatprep.mubr.bf16.mxu0 0
    %584 = vmatmul.mubr.bf16.gmra.mxu0 %v481
    %v585 = vpop.f32.mrf.mxu0
    %v586 = vadd.f32 %v502, %v585
    %v587 = vpop.f32.mrf.mxu0
    %v588 = vpop.f32.mrf.mxu0
    %v589 = vadd.f32 %v502, %v588
    %v590 = vpop.f32.mrf.mxu0
    %591 = vdwg.mxu0
    %vm592 = vcmp.gt.f32.partialorder %v586, 0.0
    %vm593 = vcmp.gt.f32.partialorder %v589, 0.0
    %v594 = vmul.f32 %v586, 0.2
    %v595 = vmul.f32 %v589, 0.2
    %v596 = vsel %vm592, %v586, %v594
    %v597 = vsel %vm593, %v589, %v595
    %v598 = vpack.c.bf16 %v597, %v596
    %v599 = vld [vmem:[#allocation5 + $0x140] sm:$0xf]
    %v600 = vld [vmem:[#allocation5 + $0x144] sm:$0xf]
    %v601 = vld [vmem:[#allocation5 + $0x148] sm:$0xf]
    %v602 = vld [vmem:[#allocation5 + $0x14c] sm:$0xf]
    %v603 = vld [vmem:[#allocation5 + $0x150] sm:$0xf]
    %v604 = vld [vmem:[#allocation5 + $0x154] sm:$0xf]
    %v605 = vld [vmem:[#allocation5 + $0x158] sm:$0xf]
    %v606 = vld [vmem:[#allocation5 + $0x15c] sm:$0xf]
    %v607 = vld [vmem:[#allocation5 + $0x160] sm:$0xf]
    %v608 = vld [vmem:[#allocation5 + $0x164] sm:$0xf]
    %v609 = vld [vmem:[#allocation5 + $0x168] sm:$0xf]
    %v610 = vld [vmem:[#allocation5 + $0x16c] sm:$0xf]
    %v611 = vld [vmem:[#allocation5 + $0x170] sm:$0xf]
    %v612 = vld [vmem:[#allocation5 + $0x174] sm:$0xf]
    %v613 = vld [vmem:[#allocation5 + $0x178] sm:$0xf]
    %v614 = vld [vmem:[#allocation5 + $0x17c] sm:$0xf]
    %v615 = vld [vmem:[#allocation7 + $0x5] sm:$0x1]
    %v616 = vlaneseq
    %v617 = vshrl.u32 %v616, 7
    %v618 = vsub.s32 0, %v617
    %v619 = vrot.slane %v615, %v618
    %v636 = vunpack.c.l.b16 %v599
    %v637 = vunpack.c.l.b16 %v600
    %v638 = vunpack.c.l.b16 %v601
    %v639 = vunpack.c.l.b16 %v602
    %v640 = vunpack.c.l.b16 %v603
    %v641 = vunpack.c.l.b16 %v604
    %v642 = vunpack.c.l.b16 %v605
    %v643 = vunpack.c.l.b16 %v606
    %v644 = vunpack.c.l.b16 %v607
    %v645 = vunpack.c.l.b16 %v608
    %v646 = vunpack.c.l.b16 %v609
    %v647 = vunpack.c.l.b16 %v610
    %v648 = vunpack.c.l.b16 %v611
    %v649 = vunpack.c.l.b16 %v612
    %v650 = vunpack.c.l.b16 %v613
    %v651 = vunpack.c.l.b16 %v614
    %v652 = vpack.c.b16 %v637, %v636
    %v653 = vpack.c.b16 %v639, %v638
    %v654 = vpack.c.b16 %v641, %v640
    %v655 = vpack.c.b16 %v643, %v642
    %v656 = vpack.c.b16 %v645, %v644
    %v657 = vpack.c.b16 %v647, %v646
    %v658 = vpack.c.b16 %v649, %v648
    %v659 = vpack.c.b16 %v651, %v650
    %668 = vmatprep.subr.bf16.mxu0 0
    %669 = vmatpush1.bf16.msra.mxu0 %v659
    %670 = vmatprep.subr.bf16.mxu0 0
    %671 = vmatpush1.bf16.msra.mxu0 %v658
    %672 = vmatprep.subr.bf16.mxu0 0
    %673 = vmatpush1.bf16.msra.mxu0 %v657
    %674 = vmatprep.subr.bf16.mxu0 0
    %675 = vmatpush1.bf16.msra.mxu0 %v656
    %676 = vmatprep.subr.bf16.mxu0 0
    %677 = vmatpush1.bf16.msra.mxu0 %v655
    %678 = vmatprep.subr.bf16.mxu0 0
    %679 = vmatpush1.bf16.msra.mxu0 %v654
    %680 = vmatprep.subr.bf16.mxu0 0
    %681 = vmatpush1.bf16.msra.mxu0 %v653
    %682 = vmatprep.subr.bf16.mxu0 0
    %683 = vmatpush1.bf16.msra.mxu0 %v652
    %684 = vmatprep.subr.bf16.mxu0 0
    %685 = vmatpush2.bf16.msra.mxu0 0
    %686 = vmatprep.subr.bf16.mxu0 0
    %687 = vmatpush2.bf16.msra.mxu0 0
    %688 = vmatprep.subr.bf16.mxu0 0
    %689 = vmatpush2.bf16.msra.mxu0 0
    %690 = vmatprep.subr.bf16.mxu0 0
    %691 = vmatpush2.bf16.msra.mxu0 0
    %692 = vmatprep.subr.bf16.mxu0 0
    %693 = vmatpush2.bf16.msra.mxu0 0
    %694 = vmatprep.subr.bf16.mxu0 0
    %695 = vmatpush2.bf16.msra.mxu0 0
    %696 = vmatprep.subr.bf16.mxu0 0
    %697 = vmatpush2.bf16.msra.mxu0 0
    %698 = vmatprep.subr.bf16.mxu0 0
    %699 = vmatpush2.bf16.msra.mxu0 0
    %700 = vmatprep.mubr.bf16.mxu0 0
    %701 = vmatmul.mubr.bf16.gmra.mxu0 %v598
    %v702 = vpop.f32.mrf.mxu0
    %v703 = vadd.f32 %v619, %v702
    %v704 = vpop.f32.mrf.mxu0
    %v705 = vpop.f32.mrf.mxu0
    %v706 = vadd.f32 %v619, %v705
    %v707 = vpop.f32.mrf.mxu0
    %708 = vdwg.mxu0
    %vm709 = vcmp.gt.f32.partialorder %v703, 0.0
    %vm710 = vcmp.gt.f32.partialorder %v706, 0.0
    %v711 = vmul.f32 %v703, 0.2
    %v712 = vmul.f32 %v706, 0.2
    %v713 = vsel %vm709, %v703, %v711
    %v714 = vsel %vm710, %v706, %v712
    %v715 = vpack.c.bf16 %v714, %v713
    %v716 = vld [vmem:[#allocation5 + $0x180] sm:$0xf]
    %v717 = vld [vmem:[#allocation5 + $0x184] sm:$0xf]
    %v718 = vld [vmem:[#allocation5 + $0x188] sm:$0xf]
    %v719 = vld [vmem:[#allocation5 + $0x18c] sm:$0xf]
    %v720 = vld [vmem:[#allocation5 + $0x190] sm:$0xf]
    %v721 = vld [vmem:[#allocation5 + $0x194] sm:$0xf]
    %v722 = vld [vmem:[#allocation5 + $0x198] sm:$0xf]
    %v723 = vld [vmem:[#allocation5 + $0x19c] sm:$0xf]
    %v724 = vld [vmem:[#allocation5 + $0x1a0] sm:$0xf]
    %v725 = vld [vmem:[#allocation5 + $0x1a4] sm:$0xf]
    %v726 = vld [vmem:[#allocation5 + $0x1a8] sm:$0xf]
    %v727 = vld [vmem:[#allocation5 + $0x1ac] sm:$0xf]
    %v728 = vld [vmem:[#allocation5 + $0x1b0] sm:$0xf]
    %v729 = vld [vmem:[#allocation5 + $0x1b4] sm:$0xf]
    %v730 = vld [vmem:[#allocation5 + $0x1b8] sm:$0xf]
    %v731 = vld [vmem:[#allocation5 + $0x1bc] sm:$0xf]
    %v732 = vld [vmem:[#allocation7 + $0x6] sm:$0x1]
    %v733 = vlaneseq
    %v734 = vshrl.u32 %v733, 7
    %v735 = vsub.s32 0, %v734
    %v736 = vrot.slane %v732, %v735
    %v753 = vunpack.c.l.b16 %v716
    %v754 = vunpack.c.l.b16 %v717
    %v755 = vunpack.c.l.b16 %v718
    %v756 = vunpack.c.l.b16 %v719
    %v757 = vunpack.c.l.b16 %v720
    %v758 = vunpack.c.l.b16 %v721
    %v759 = vunpack.c.l.b16 %v722
    %v760 = vunpack.c.l.b16 %v723
    %v761 = vunpack.c.l.b16 %v724
    %v762 = vunpack.c.l.b16 %v725
    %v763 = vunpack.c.l.b16 %v726
    %v764 = vunpack.c.l.b16 %v727
    %v765 = vunpack.c.l.b16 %v728
    %v766 = vunpack.c.l.b16 %v729
    %v767 = vunpack.c.l.b16 %v730
    %v768 = vunpack.c.l.b16 %v731
    %v769 = vpack.c.b16 %v754, %v753
    %v770 = vpack.c.b16 %v756, %v755
    %v771 = vpack.c.b16 %v758, %v757
    %v772 = vpack.c.b16 %v760, %v759
    %v773 = vpack.c.b16 %v762, %v761
    %v774 = vpack.c.b16 %v764, %v763
    %v775 = vpack.c.b16 %v766, %v765
    %v776 = vpack.c.b16 %v768, %v767
    %785 = vmatprep.subr.bf16.mxu0 0
    %786 = vmatpush1.bf16.msra.mxu0 %v776
    %787 = vmatprep.subr.bf16.mxu0 0
    %788 = vmatpush1.bf16.msra.mxu0 %v775
    %789 = vmatprep.subr.bf16.mxu0 0
    %790 = vmatpush1.bf16.msra.mxu0 %v774
    %791 = vmatprep.subr.bf16.mxu0 0
    %792 = vmatpush1.bf16.msra.mxu0 %v773
    %793 = vmatprep.subr.bf16.mxu0 0
    %794 = vmatpush1.bf16.msra.mxu0 %v772
    %795 = vmatprep.subr.bf16.mxu0 0
    %796 = vmatpush1.bf16.msra.mxu0 %v771
    %797 = vmatprep.subr.bf16.mxu0 0
    %798 = vmatpush1.bf16.msra.mxu0 %v770
    %799 = vmatprep.subr.bf16.mxu0 0
    %800 = vmatpush1.bf16.msra.mxu0 %v769
    %801 = vmatprep.subr.bf16.mxu0 0
    %802 = vmatpush2.bf16.msra.mxu0 0
    %803 = vmatprep.subr.bf16.mxu0 0
    %804 = vmatpush2.bf16.msra.mxu0 0
    %805 = vmatprep.subr.bf16.mxu0 0
    %806 = vmatpush2.bf16.msra.mxu0 0
    %807 = vmatprep.subr.bf16.mxu0 0
    %808 = vmatpush2.bf16.msra.mxu0 0
    %809 = vmatprep.subr.bf16.mxu0 0
    %810 = vmatpush2.bf16.msra.mxu0 0
    %811 = vmatprep.subr.bf16.mxu0 0
    %812 = vmatpush2.bf16.msra.mxu0 0
    %813 = vmatprep.subr.bf16.mxu0 0
    %814 = vmatpush2.bf16.msra.mxu0 0
    %815 = vmatprep.subr.bf16.mxu0 0
    %816 = vmatpush2.bf16.msra.mxu0 0
    %817 = vmatprep.mubr.bf16.mxu0 0
    %818 = vmatmul.mubr.bf16.gmra.mxu0 %v715
    %v819 = vpop.f32.mrf.mxu0
    %v820 = vadd.f32 %v736, %v819
    %v821 = vpop.f32.mrf.mxu0
    %v822 = vpop.f32.mrf.mxu0
    %v823 = vadd.f32 %v736, %v822
    %v824 = vpop.f32.mrf.mxu0
    %825 = vdwg.mxu0
    %v826 = vlaneseq
    %v827 = vand.u32 %v826, 127
    %vm828 = vcmp.lt.s32.totalorder %v827, 7
    %v829 = vsel %vm828, %v820, -1e+30
    %v830 = vsel %vm828, %v823, -1e+30
    %831 = vmax.xlane.f32.xlu0 %v829
    %v832 = vpop.xlane.xlu0 %831
    %833 = vmax.xlane.f32.xlu0 %v830
    %v834 = vpop.xlane.xlu0 %833
    %v835 = vsub.f32 %v829, %v832
    %v836 = vsub.f32 %v830, %v834
    %v837 = vmul.f32 %v835, 1.442695
    %v838 = vpow.pop %v837
    %v839 = vmul.f32 %v836, 1.442695
    %v840 = vpow.pop %v839
    %841 = vmatprep.subr.mxu0 0.0
    %842 = vmatpush1.msra.mxu0 1.0
    %843 = vmatprep.subr.mxu0 0.0
    %844 = vmatpush1.msra.mxu0 1.0
    %845 = vmatprep.subr.mxu0 0.0
    %846 = vmatpush1.msra.mxu0 1.0
    %847 = vmatprep.subr.mxu0 0.0
    %848 = vmatpush1.msra.mxu0 1.0
    %849 = vmatprep.subr.mxu0 0.0
    %850 = vmatpush1.msra.mxu0 1.0
    %851 = vmatprep.subr.mxu0 0.0
    %852 = vmatpush1.msra.mxu0 1.0
    %853 = vmatprep.subr.mxu0 0.0
    %854 = vmatpush1.msra.mxu0 1.0
    %855 = vmatprep.subr.mxu0 0.0
    %856 = vmatpush1.msra.mxu0 1.0
    %857 = vmatprep.subr.mxu0 0.0
    %858 = vmatpush1.msra.mxu0 1.0
    %859 = vmatprep.subr.mxu0 0.0
    %860 = vmatpush1.msra.mxu0 1.0
    %861 = vmatprep.subr.mxu0 0.0
    %862 = vmatpush1.msra.mxu0 1.0
    %863 = vmatprep.subr.mxu0 0.0
    %864 = vmatpush1.msra.mxu0 1.0
    %865 = vmatprep.subr.mxu0 0.0
    %866 = vmatpush1.msra.mxu0 1.0
    %867 = vmatprep.subr.mxu0 0.0
    %868 = vmatpush1.msra.mxu0 1.0
    %869 = vmatprep.subr.mxu0 0.0
    %870 = vmatpush1.msra.mxu0 1.0
    %871 = vmatprep.subr.mxu0 0.0
    %872 = vmatpush1.msra.mxu0 1.0
    %873 = vmatprep.subr.mxu0 0.0
    %874 = vmatpush2.msra.mxu0 0.0
    %875 = vmatprep.subr.mxu0 0.0
    %876 = vmatpush2.msra.mxu0 0.0
    %877 = vmatprep.subr.mxu0 0.0
    %878 = vmatpush2.msra.mxu0 0.0
    %879 = vmatprep.subr.mxu0 0.0
    %880 = vmatpush2.msra.mxu0 0.0
    %881 = vmatprep.subr.mxu0 0.0
    %882 = vmatpush2.msra.mxu0 0.0
    %883 = vmatprep.subr.mxu0 0.0
    %884 = vmatpush2.msra.mxu0 0.0
    %885 = vmatprep.subr.mxu0 0.0
    %886 = vmatpush2.msra.mxu0 0.0
    %887 = vmatprep.subr.mxu0 0.0
    %888 = vmatpush2.msra.mxu0 0.0
    %889 = vmatprep.subr.mxu0 0.0
    %890 = vmatpush2.msra.mxu0 0.0
    %891 = vmatprep.subr.mxu0 0.0
    %892 = vmatpush2.msra.mxu0 0.0
    %893 = vmatprep.subr.mxu0 0.0
    %894 = vmatpush2.msra.mxu0 0.0
    %895 = vmatprep.subr.mxu0 0.0
    %896 = vmatpush2.msra.mxu0 0.0
    %897 = vmatprep.subr.mxu0 0.0
    %898 = vmatpush2.msra.mxu0 0.0
    %899 = vmatprep.subr.mxu0 0.0
    %900 = vmatpush2.msra.mxu0 0.0
    %901 = vmatprep.subr.mxu0 0.0
    %902 = vmatpush2.msra.mxu0 0.0
    %903 = vmatprep.subr.mxu0 0.0
    %904 = vmatpush2.msra.mxu0 0.0
    %905 = vmatprep.mubr.f32.mxu0 0.0
    %906 = vmatmul.mubr.f32.gmra.mxu0 %v838
    %v907 = vpop.f32.mrf.mxu0
    %v908 = vadd.f32 0.0, %v907
    %v909 = vpop.f32.mrf.mxu0
    %910 = vmatprep.mubr.f32.mxu0 0.0
    %911 = vmatmul.mubr.f32.gmra.mxu0 %v840
    %v912 = vpop.f32.mrf.mxu0
    %v913 = vadd.f32 0.0, %v912
    %v914 = vpop.f32.mrf.mxu0
    %915 = vdwg.mxu0
    %v916 = vlog2.pop %v908
    %v917 = vmul.f32 %v916, 0.6931472
    %v918 = vlog2.pop %v913
    %v919 = vmul.f32 %v918, 0.6931472
    %v920 = vsub.f32 %v835, %v917
    %v921 = vsub.f32 %v836, %v919
    %922 = vst [vmem:[#allocation8] sm:$0xff] %v920
    %923 = vst [vmem:[#allocation8 + $0x8] sm:$0xff] %v921
    // Predicated region
    $region26: #{_forward_jit.1} parent=1 // pred_check
      _
    $region27: #{_forward_jit.1} parent=1 // pred_check_branch
      %925 = sbr.rel (0) target = $region29
    $region28: #{_forward_jit.1} parent=1 // pred_region
      %s927 = ssub.s32 256, 128
      %928 = vsyncadd [#allocation4], %s927
      %s929 = sshll.u32 [#allocation8], 4
      %s930 = int_to_ptr.vmem [resolvable:$true] %s929
      %935 = dma.vmem_to_hbm [thread:$0]  %s930, 128, %s3, [#allocation4], 128, 128, 8
    $region29: #{_forward_jit.1} parent=1 // pred_fallthru
      _
    // Predicated region
    $region30: #{_forward_jit.1} parent=1 // pred_check
      _
    $region31: #{_forward_jit.1} parent=1 // pred_check_branch
      %937 = sbr.rel (0) target = $region33
    $region32: #{_forward_jit.1} parent=1 // pred_region
      %938 = dma.done [#allocation4], 256
    $region33: #{_forward_jit.1} parent=1 // pred_fallthru
      _
    %939 = vsyncpa [#allocation3], 1
    %940 = vsyncpa [#allocation6], 1
    %941 = vsyncpa [#allocation4], 1

</llo_original>
